<compile_context>
chip_gen: v7x
topology: tpu7x:2x2x1
jax: 0.10.0
libtpu: 0.0.40
codegen_flags: <defaults>
</compile_context>

<pallas_src>
import functools

import jax
import jax.numpy as jnp
from jax.experimental import pallas as pl
from jax.experimental.pallas import tpu as pltpu

K = 5          # DGM_d default k
_SHIFT = 8.0   # lq >= -2.8 always (see q construction), so lq + _SHIFT > 0 (packing needs > 0)


def _tpu_vmem_capacity_bytes():
    try:
        cap = getattr(pltpu.get_tpu_info(), "vmem_capacity_bytes", None)
        if cap:
            return int(cap)
    except Exception:
        pass
    return 64 * 1024 * 1024          # conservative default (v7x per-TensorCore VMEM)


def _vmem_limit_bytes():
    return _tpu_vmem_capacity_bytes() * 3 // 4


def _pick_batch_tile(b, n):
    """Pack several batch elements per step when n is small, but keep >= 2 grid steps on the
    'parallel' batch axis so both TensorCores of a v7x chip get work."""
    bt = max(1, min(b, 1024 // max(n, 1)))
    if b >= 2:
        bt = min(bt, b // 2)
    bt = max(bt, 1)
    while b % bt:
        bt -= 1
    return bt


def _pick_row_tile(n, bt, d_pad, vmem_cap):
    """Largest row tile that is a multiple of 8 dividing n (or the full n) AND keeps the ~9
    live f32 (bt, tm, n) temporaries plus the xe_all scratch inside ~40% of VMEM."""
    budget = int(0.4 * vmem_cap) - 4 * bt * n * d_pad      # leave room for the hoisted scratch
    per_row = 9 * 4 * bt * n                               # ~9 live f32 (bt, tm, n) temps
    cap = (budget // per_row) // 8 * 8 if budget > per_row * 8 else 8
    target = max(8, min(512, cap))
    if n <= target:
        return n
    best = None
    for cand in range(8, min(target, n) + 1, 8):
        if n % cand == 0:
            best = cand
    return best or n


def _make_dgm_kernel(*, bt, tm, n, d, d_pad, k):
    idx_bits = max(1, (n - 1).bit_length())   # mantissa bits used to pack a column index
    low_mask = (1 << idx_bits) - 1
    hi_mask = ~low_mask                       # negative python int == int32 bit pattern

    def kernel(seed_ref, scale_ref, x_ref, w_ref, b_ref,
               xe_ref, lp_ref, idx_ref, xe_scr, sqc_scr):
        i = pl.program_id(0)                  # batch tile  ("parallel")
        j = pl.program_id(1)                  # row tile    ("arbitrary", innermost)
        scale = scale_ref[0]                  # read the SMEM scalar once
        f_in = w_ref.shape[0]

        # ---- hoisted per-batch-tile work: embed ALL n nodes once (row tile 0) ------------
        @pl.when(j == 0)
        def _():
            xf = x_ref[...].reshape(bt * n, f_in)
            xe_all_new = (jnp.dot(xf, w_ref[...], preferred_element_type=jnp.float32)
                          + b_ref[...]).reshape(bt, n, d_pad)
            xe_scr[...] = xe_all_new
            sqc_scr[...] = jnp.sum(xe_all_new * xe_all_new, axis=-1)[:, None, :]

        row0 = j * tm
        xe_rows = xe_scr[:, pl.ds(row0, tm), :]            # (bt, tm, d_pad)
        xe_all = xe_scr[...]                               # (bt, n,  d_pad)
        xe_ref[...] = xe_rows[..., :d]                     # un-padded embedding out

        # ---- pairwise squared euclidean distances: |xi|^2 + |xj|^2 - 2 xi.xj --------------
        gram = jnp.einsum("bmd,bnd->bmn", xe_rows, xe_all,
                          preferred_element_type=jnp.float32)           # (bt, tm, n)
        sq_r = jnp.sum(xe_rows * xe_rows, axis=-1, keepdims=True)       # (bt, tm, 1)
        dist = jnp.maximum(sq_r + sqc_scr[...] - 2.0 * gram, 0.0)
        # TODO(synk): bf16 gram (+ exact f32 recompute of the k selected distances) would cut
        # MXU passes ~3-6x on v6e/v7x; kept f32 to avoid an in-kernel gather for the recompute.

        # ---- Gumbel noise, generated on-chip with a portable counter hash -----------------
        bidx = jax.lax.broadcasted_iota(jnp.int32, (bt, tm, n), 0)
        ridx = jax.lax.broadcasted_iota(jnp.int32, (bt, tm, n), 1)
        col = jax.lax.broadcasted_iota(jnp.int32, (bt, tm, n), 2)
        ctr = ((i * bt + bidx) * n + (j * tm + ridx)) * n + col         # unique per element
        h = jax.lax.bitcast_convert_type(ctr, jnp.uint32) * jnp.uint32(0x9E3779B9)
        h = h + jax.lax.bitcast_convert_type(seed_ref[0], jnp.uint32)
        h = (h ^ (h >> 16)) * jnp.uint32(0x7FEB352D)                    # splitmix32 finalizer
        h = (h ^ (h >> 15)) * jnp.uint32(0x846CA68B)
        h = h ^ (h >> 16)
        # uniform q strictly inside (0, 1): mantissa trick, LSB forced so q >= 2^-23 > 0
        q = jax.lax.bitcast_convert_type((h >> 9) | jnp.uint32(0x3F800001),
                                         jnp.float32) - 1.0
        t = jnp.maximum(-jnp.log(q), 1e-7)    # guard approx log(q) ~ 0 for q -> 1
        lq = dist * scale - jnp.log(t)        # lq >= -2.8 always

        # ---- fused top-k of (-lq) == k smallest lq ----------------------------------------
        # The column index is packed into the low `idx_bits` mantissa bits of the strictly
        # positive shifted value (positive-float bit order == value order), so each round is
        # ONE lane min-reduce + selects.  Truncation only affects tie-breaking (ties resolve
        # to the smallest column); the returned logprob is recomputed exactly below.
        kbits = jax.lax.bitcast_convert_type(lq + _SHIFT, jnp.int32)
        cur = jax.lax.bitcast_convert_type((kbits & jnp.int32(hi_mask)) | col, jnp.float32)
        inf = jnp.float32(jnp.inf)
        lp_cols, idx_cols = [], []
        for _ in range(k):
            kmin = jnp.min(cur, axis=-1, keepdims=True)                 # (bt, tm, 1)
            amn = jax.lax.bitcast_convert_type(kmin, jnp.int32) & jnp.int32(low_mask)
            sel = col == amn
            lq_sel = jnp.sum(jnp.where(sel, lq, 0.0), axis=-1, keepdims=True)   # exact f32
            lp_cols.append(-lq_sel)                                     # logprob = -(m-th lq)
            idx_cols.append(amn)
            cur = jnp.where(sel, inf, cur)                              # drop chosen column
        # TODO(synk): hierarchical per-128-lane-block top-k (and column-chunked streaming for
        # n >= 4-8K) would cut the per-round full-width reduce work ~4-5x.
        lp_ref[...] = jnp.concatenate(lp_cols, axis=-1)                 # (bt, tm, k)
        idx_ref[...] = jnp.concatenate(idx_cols, axis=-1)               # (bt, tm, k)
        # TODO(synk): lane-dense (tm-last) lp/idx/xe store layout for large-n regimes.

    return kernel


@functools.partial(jax.jit, static_argnames=("k",))
def dgm_d_forward(x, w, bias, temperature, seed, *, k=K):
    """Forward pass of DGM_d (training path, sparse=True, embed_f = linear layer).

    Returns (x_embedded, edges_hat, logprobs) like the PyTorch module.  Gumbel noise is
    generated on-chip (hash of `seed` and element coordinates), so results match the torch
    module in distribution rather than bitwise.
    """
    b, n, f_in = x.shape
    d = w.shape[1]
    assert k <= n, "DGM_d requires k <= number of nodes"
    assert n <= (1 << 16), "index packing supports up to 2^16 nodes"
    # TODO(synk): for n > 2^16, fall back to an exact two-reduce min/argmin per round.

    # Zero-pad the embedding dim to a full 128-lane MXU tile; zero padding leaves |xi|^2 and
    # xi.xj (hence the distances) bit-identical.
    d_pad = max(128, ((d + 127) // 128) * 128)
    x = x.astype(jnp.float32)
    w_p = w.astype(jnp.float32)
    bias_p = bias.astype(jnp.float32)
    if d_pad != d:
        w_p = jnp.pad(w_p, ((0, 0), (0, d_pad - d)))
        bias_p = jnp.pad(bias_p, ((0, 0), (0, d_pad - d)))

    scale = jnp.exp(jnp.clip(temperature, -5.0, 5.0)).reshape(1).astype(jnp.float32)
    seed_arr = jnp.asarray(seed, dtype=jnp.int32).reshape(1)

    vmem_cap = _tpu_vmem_capacity_bytes()
    bt = _pick_batch_tile(b, n)
    tm = _pick_row_tile(n, bt, d_pad, vmem_cap)
    grid = (b // bt, n // tm)

    grid_spec = pltpu.PrefetchScalarGridSpec(
        num_scalar_prefetch=2,                    # seed + exp(clamp(T)) live in SMEM
        grid=grid,
        in_specs=[
            pl.BlockSpec((bt, n, f_in), lambda i, j, *_: (i, 0, 0)),    # x (all nodes)
            pl.BlockSpec((f_in, d_pad), lambda i, j, *_: (0, 0)),       # W   (replicated)
            pl.BlockSpec((1, d_pad), lambda i, j, *_: (0, 0)),          # bias (replicated)
        ],
        out_specs=[
            pl.BlockSpec((bt, tm, d), lambda i, j, *_: (i, j, 0)),      # embedded x
            pl.BlockSpec((bt, tm, k), lambda i, j, *_: (i, j, 0)),      # logprobs
            pl.BlockSpec((bt, tm, k), lambda i, j, *_: (i, j, 0)),      # top-k indices
        ],
        scratch_shapes=[
            pltpu.VMEM((bt, n, d_pad), jnp.float32),                    # hoisted xe_all
            pltpu.VMEM((bt, 1, n), jnp.float32),                        # hoisted column norms
        ],
    )
    out_shapes = (
        jax.ShapeDtypeStruct((b, n, d), jnp.float32),
        jax.ShapeDtypeStruct((b, n, k), jnp.float32),
        jax.ShapeDtypeStruct((b, n, k), jnp.int32),
    )
    xe, logprobs, indices = pl.pallas_call(
        _make_dgm_kernel(bt=bt, tm=tm, n=n, d=d, d_pad=d_pad, k=k),
        grid_spec=grid_spec,
        out_shape=out_shapes,
        compiler_params=pltpu.CompilerParams(
            dimension_semantics=("parallel", "arbitrary"),
            vmem_limit_bytes=_vmem_limit_bytes(),
        ),
    )(seed_arr, scale, x, w_p, bias_p)

    # --- glue: edge assembly (matches sample_without_replacement, sparse=True) ------------
    rows = jnp.broadcast_to(jnp.arange(n, dtype=jnp.int32)[None, :, None], (b, n, k))
    edges = jnp.stack((indices.reshape(b, -1), rows.reshape(b, -1)), axis=-2)   # (b, 2, n*k)
    offset = (jnp.arange(b, dtype=jnp.int32) * n)[:, None, None]
    edges_hat = jnp.transpose(edges + offset, (1, 0, 2)).reshape(2, -1)         # (2, b*n*k)
    return xe, edges_hat, logprobs


if __name__ == "__main__":
    b, n, f_in, d = 2, 16, 8, 32

    key = jax.random.PRNGKey(0)
    kx, kw, kb = jax.random.split(key, 3)
    x = jax.random.normal(kx, (b, n, f_in), dtype=jnp.float32)
    w = jax.random.normal(kw, (f_in, d), dtype=jnp.float32) * 0.1        # embed_f weights
    bias = jax.random.normal(kb, (1, d), dtype=jnp.float32) * 0.01       # embed_f bias
    temperature = jnp.float32(4.0)                                       # DGM_d init
    seed = jnp.int32(0)

    xe, edges_hat, logprobs = dgm_d_forward(x, w, bias, temperature, seed)
    jax.block_until_ready((xe, edges_hat, logprobs))

    # --- validation ------------------------------------------------------------------------
    # 1) embedding matches a pure-JAX linear layer
    xe_ref = x @ w + bias
    assert xe.shape == (b, n, d)
    assert jnp.allclose(xe, xe_ref, rtol=1e-3, atol=1e-3)

    # 2) shapes / dtypes
    assert edges_hat.shape == (2, b * n * K)
    assert logprobs.shape == (b, n, K) and logprobs.dtype == jnp.float32

    # Noise is drawn in-kernel, so validate against invariants of the Gumbel-top-k procedure.
    off = (jnp.arange(b, dtype=jnp.int32) * n)[:, None, None]
    idx_sel = edges_hat[0].reshape(b, n, K) - off        # recovered neighbour indices
    row_sel = edges_hat[1].reshape(b, n, K) - off        # recovered source-node indices

    # 3) edge bookkeeping: source rows, index ranges, k distinct neighbours per node
    assert (row_sel == jnp.arange(n, dtype=jnp.int32)[None, :, None]).all()
    assert (idx_sel >= 0).all() and (idx_sel < n).all()
    s_idx = jnp.sort(idx_sel, axis=-1)
    assert (s_idx[..., 1:] > s_idx[..., :-1]).all()
    assert jnp.isfinite(logprobs).all()
    # descending like torch.topk (small slack: selection order uses truncated packed values)
    assert (logprobs[..., :-1] >= logprobs[..., 1:] - 1e-2).all()

    # 4) Gumbel consistency: logprobs + dist[selected]*scale equals log(-log(q)) at the chosen
    #    column, which for q in [2^-23, 1-2^-23] (plus the 1e-7 guard) lies in ~[-16.12, 2.78].
    diff = xe[:, :, None, :] - xe[:, None, :, :]
    dist_kernel = jnp.sum(diff * diff, axis=-1)
    dist_sel = jnp.take_along_axis(dist_kernel, idx_sel, axis=-1)
    scale_val = jnp.exp(jnp.clip(temperature, -5.0, 5.0))
    g_implied = logprobs + dist_sel * scale_val
    assert (g_implied > -16.3).all() and (g_implied < 3.0).all()

    print("KERNEL_OK")
</pallas_src>

<mosaic_0001>
module attributes {stable_mosaic.version = 11 : i64} {
  func.func @kernel(%arg0: i32, %arg1: i32, %arg2: memref<1xi32, #tpu.memory_space<smem>>, %arg3: memref<1xf32, #tpu.memory_space<smem>>, %arg4: memref<1x16x8xf32, #tpu.memory_space<vmem>>, %arg5: memref<8x128xf32, #tpu.memory_space<vmem>>, %arg6: memref<1x128xf32, #tpu.memory_space<vmem>>, %arg7: memref<1x16x32xf32, #tpu.memory_space<vmem>>, %arg8: memref<1x16x5xf32, #tpu.memory_space<vmem>>, %arg9: memref<1x16x5xi32, #tpu.memory_space<vmem>>, %arg10: memref<1x16x128xf32, #tpu.memory_space<vmem>>, %arg11: memref<1x1x16xf32, #tpu.memory_space<vmem>>) attributes {dimension_semantics = [#tpu.dimension_semantics<parallel>, #tpu.dimension_semantics<arbitrary>], iteration_bounds = array<i64: 2, 1>, scalar_prefetch = 2 : i64, scratch_operands = 2 : i64, tpu.core_type = #tpu.core_type<tc>, window_params = [{transform_indices = @transform_0, window_bounds = array<i64: 1, 16, 8>}, {pipeline_mode = #tpu.pipeline_mode<synchronous>, transform_indices = @transform_1, window_bounds = array<i64: 8, 128>}, {pipeline_mode = #tpu.pipeline_mode<synchronous>, transform_indices = @transform_2, window_bounds = array<i64: 1, 128>}, {transform_indices = @transform_3, window_bounds = array<i64: 1, 16, 32>}, {transform_indices = @transform_4, window_bounds = array<i64: 1, 16, 5>}, {transform_indices = @transform_5, window_bounds = array<i64: 1, 16, 5>}]} {
    %c0 = arith.constant 0 : index
    %0 = memref.load %arg3[%c0] : memref<1xf32, #tpu.memory_space<smem>>
    %c0_i32 = arith.constant 0 : i32
    %1 = arith.cmpi eq, %arg1, %c0_i32 : i32
    %2 = arith.extui %1 : i1 to i32
    %c0_i32_0 = arith.constant 0 : i32
    %3 = arith.cmpi ne, %2, %c0_i32_0 : i32
    scf.if %3 {
      %c0_60 = arith.constant 0 : index
      %c0_61 = arith.constant 0 : index
      %c0_62 = arith.constant 0 : index
      %158 = vector.load %arg4[%c0_60, %c0_61, %c0_62] : memref<1x16x8xf32, #tpu.memory_space<vmem>>, vector<1x16x8xf32>
      %159 = vector.shape_cast %158 : vector<1x16x8xf32> to vector<16x8xf32>
      %c0_63 = arith.constant 0 : index
      %c0_64 = arith.constant 0 : index
      %160 = vector.load %arg5[%c0_63, %c0_64] : memref<8x128xf32, #tpu.memory_space<vmem>>, vector<8x128xf32>
      %cst_65 = arith.constant dense<0.000000e+00> : vector<16x128xf32>
      %161 = tpu.matmul %159, %160, %cst_65 {dimension_numbers = #tpu.dot_dimension_numbers<[1], [0], [0], [1], [0, 0, 1, 1], [], []>} : vector<16x8xf32>, vector<8x128xf32>, vector<16x128xf32> -> vector<16x128xf32>
      %c0_66 = arith.constant 0 : index
      %c0_67 = arith.constant 0 : index
      %162 = vector.load %arg6[%c0_66, %c0_67] : memref<1x128xf32, #tpu.memory_space<vmem>>, vector<1x128xf32>
      %163 = vector.broadcast %162 : vector<1x128xf32> to vector<16x128xf32>
      %164 = arith.addf %161, %163 : vector<16x128xf32>
      %165 = vector.shape_cast %164 : vector<16x128xf32> to vector<1x16x128xf32>
      %c0_68 = arith.constant 0 : index
      %c0_69 = arith.constant 0 : index
      %c0_70 = arith.constant 0 : index
      %166 = vector.load %arg10[%c0_68, %c0_69, %c0_70] : memref<1x16x128xf32, #tpu.memory_space<vmem>>, vector<1x16x128xf32>
      tpu.vector_store %arg10[%c0_68, %c0_69, %c0_70], %165 {strides = array<i32>} : memref<1x16x128xf32, #tpu.memory_space<vmem>>, vector<1x16x128xf32>,
      %167 = arith.mulf %165, %165 : vector<1x16x128xf32>
      %cst_71 = arith.constant dense<0.000000e+00> : vector<1x16xf32>
      %168 = vector.multi_reduction <add>, %167, %cst_71 [2] : vector<1x16x128xf32> to vector<1x16xf32>
      %169 = vector.shape_cast %168 : vector<1x16xf32> to vector<1x1x16xf32>
      %c0_72 = arith.constant 0 : index
      %c0_73 = arith.constant 0 : index
      %c0_74 = arith.constant 0 : index
      %170 = vector.load %arg11[%c0_72, %c0_73, %c0_74] : memref<1x1x16xf32, #tpu.memory_space<vmem>>, vector<1x1x16xf32>
      tpu.vector_store %arg11[%c0_72, %c0_73, %c0_74], %169 {strides = array<i32>} : memref<1x1x16xf32, #tpu.memory_space<vmem>>, vector<1x1x16xf32>,
    } else {
    }
    %c16_i32 = arith.constant 16 : i32
    %4 = arith.muli %arg1, %c16_i32 : i32
    %c0_1 = arith.constant 0 : index
    %5 = arith.index_cast %4 : i32 to index
    %c0_2 = arith.constant 0 : index
    %6 = vector.load %arg10[%c0_1, %5, %c0_2] : memref<1x16x128xf32, #tpu.memory_space<vmem>>, vector<1x16x128xf32>
    %c0_3 = arith.constant 0 : index
    %c0_4 = arith.constant 0 : index
    %c0_5 = arith.constant 0 : index
    %7 = vector.load %arg10[%c0_3, %c0_4, %c0_5] : memref<1x16x128xf32, #tpu.memory_space<vmem>>, vector<1x16x128xf32>
    %8 = vector.extract_strided_slice %6 {offsets = [0, 0, 0], sizes = [1, 16, 32], strides = [1, 1, 1]} : vector<1x16x128xf32> to vector<1x16x32xf32>
    %c0_6 = arith.constant 0 : index
    %c0_7 = arith.constant 0 : index
    %c0_8 = arith.constant 0 : index
    %9 = vector.load %arg7[%c0_6, %c0_7, %c0_8] : memref<1x16x32xf32, #tpu.memory_space<vmem>>, vector<1x16x32xf32>
    tpu.vector_store %arg7[%c0_6, %c0_7, %c0_8], %8 {strides = array<i32>} : memref<1x16x32xf32, #tpu.memory_space<vmem>>, vector<1x16x32xf32>,
    "tpu.trace_start"() <{level = 10 : i32, message = "bmd,bnd->bmn"}> : () -> ()
    %cst = arith.constant dense<0.000000e+00> : vector<1x16x16xf32>
    %10 = tpu.matmul %6, %7, %cst {dimension_numbers = #tpu.dot_dimension_numbers<[2], [2], [1], [1], [0, 0, 0, 1, 1, 1], [0], [0]>} : vector<1x16x128xf32>, vector<1x16x128xf32>, vector<1x16x16xf32> -> vector<1x16x16xf32>
    "tpu.trace_stop"() : () -> ()
    %11 = arith.mulf %6, %6 : vector<1x16x128xf32>
    %cst_9 = arith.constant dense<0.000000e+00> : vector<1x16xf32>
    %12 = vector.multi_reduction <add>, %11, %cst_9 [2] : vector<1x16x128xf32> to vector<1x16xf32>
    %13 = vector.shape_cast %12 : vector<1x16xf32> to vector<1x16x1xf32>
    %c0_10 = arith.constant 0 : index
    %c0_11 = arith.constant 0 : index
    %c0_12 = arith.constant 0 : index
    %14 = vector.load %arg11[%c0_10, %c0_11, %c0_12] : memref<1x1x16xf32, #tpu.memory_space<vmem>>, vector<1x1x16xf32>
    %15 = vector.broadcast %13 : vector<1x16x1xf32> to vector<1x16x16xf32>
    %16 = vector.broadcast %14 : vector<1x1x16xf32> to vector<1x16x16xf32>
    %17 = arith.addf %15, %16 : vector<1x16x16xf32>
    %cst_13 = arith.constant 2.000000e+00 : f32
    %18 = vector.broadcast %cst_13 : f32 to vector<1x16x16xf32>
    %19 = arith.mulf %18, %10 : vector<1x16x16xf32>
    %20 = arith.subf %17, %19 : vector<1x16x16xf32>
    %cst_14 = arith.constant 0.000000e+00 : f32
    %21 = vector.broadcast %cst_14 : f32 to vector<1x16x16xf32>
    %22 = arith.maximumf %20, %21 : vector<1x16x16xf32>
    %23 = tpu.iota {dimensions = array<i32: 0>} : vector<1x16x16xi32>
    %24 = tpu.iota {dimensions = array<i32: 1>} : vector<1x16x16xi32>
    %25 = tpu.iota {dimensions = array<i32: 2>} : vector<1x16x16xi32>
    %c1_i32 = arith.constant 1 : i32
    %26 = arith.muli %arg0, %c1_i32 : i32
    %27 = vector.broadcast %26 : i32 to vector<1x16x16xi32>
    %28 = arith.addi %27, %23 : vector<1x16x16xi32>
    %c16_i32_15 = arith.constant 16 : i32
    %29 = vector.broadcast %c16_i32_15 : i32 to vector<1x16x16xi32>
    %30 = arith.muli %28, %29 : vector<1x16x16xi32>
    %c16_i32_16 = arith.constant 16 : i32
    %31 = arith.muli %arg1, %c16_i32_16 : i32
    %32 = vector.broadcast %31 : i32 to vector<1x16x16xi32>
    %33 = arith.addi %32, %24 : vector<1x16x16xi32>
    %34 = arith.addi %30, %33 : vector<1x16x16xi32>
    %c16_i32_17 = arith.constant 16 : i32
    %35 = vector.broadcast %c16_i32_17 : i32 to vector<1x16x16xi32>
    %36 = arith.muli %34, %35 : vector<1x16x16xi32>
    %37 = arith.addi %36, %25 : vector<1x16x16xi32>
    %38 = tpu.bitcast %37 : vector<1x16x16xi32> -> vector<1x16x16xi32>
    %c-1640531527_i32 = arith.constant -1640531527 : i32
    %39 = vector.broadcast %c-1640531527_i32 : i32 to vector<1x16x16xi32>
    %40 = arith.muli %38, %39 : vector<1x16x16xi32>
    %c0_18 = arith.constant 0 : index
    %41 = memref.load %arg2[%c0_18] : memref<1xi32, #tpu.memory_space<smem>>
    %42 = arith.bitcast %41 : i32 to i32
    %43 = vector.broadcast %42 : i32 to vector<1x16x16xi32>
    %44 = arith.addi %40, %43 : vector<1x16x16xi32>
    %c16_i32_19 = arith.constant 16 : i32
    %45 = vector.broadcast %c16_i32_19 : i32 to vector<1x16x16xi32>
    %46 = arith.shrui %44, %45 : vector<1x16x16xi32>
    %47 = arith.xori %44, %46 : vector<1x16x16xi32>
    %c2146121005_i32 = arith.constant 2146121005 : i32
    %48 = vector.broadcast %c2146121005_i32 : i32 to vector<1x16x16xi32>
    %49 = arith.muli %47, %48 : vector<1x16x16xi32>
    %c15_i32 = arith.constant 15 : i32
    %50 = vector.broadcast %c15_i32 : i32 to vector<1x16x16xi32>
    %51 = arith.shrui %49, %50 : vector<1x16x16xi32>
    %52 = arith.xori %49, %51 : vector<1x16x16xi32>
    %c-2073254261_i32 = arith.constant -2073254261 : i32
    %53 = vector.broadcast %c-2073254261_i32 : i32 to vector<1x16x16xi32>
    %54 = arith.muli %52, %53 : vector<1x16x16xi32>
    %c16_i32_20 = arith.constant 16 : i32
    %55 = vector.broadcast %c16_i32_20 : i32 to vector<1x16x16xi32>
    %56 = arith.shrui %54, %55 : vector<1x16x16xi32>
    %57 = arith.xori %54, %56 : vector<1x16x16xi32>
    %c9_i32 = arith.constant 9 : i32
    %58 = vector.broadcast %c9_i32 : i32 to vector<1x16x16xi32>
    %59 = arith.shrui %57, %58 : vector<1x16x16xi32>
    %c1065353217_i32 = arith.constant 1065353217 : i32
    %60 = vector.broadcast %c1065353217_i32 : i32 to vector<1x16x16xi32>
    %61 = arith.ori %59, %60 : vector<1x16x16xi32>
    %62 = tpu.bitcast %61 : vector<1x16x16xi32> -> vector<1x16x16xf32>
    %cst_21 = arith.constant 1.000000e+00 : f32
    %63 = vector.broadcast %cst_21 : f32 to vector<1x16x16xf32>
    %64 = arith.subf %62, %63 : vector<1x16x16xf32>
    %65 = math.log %64 : vector<1x16x16xf32>
    %cst_22 = arith.constant 0.000000e+00 : f32
    %66 = vector.broadcast %cst_22 : f32 to vector<1x16x16xf32>
    %67 = arith.subf %66, %65 : vector<1x16x16xf32>
    %cst_23 = arith.constant 1.000000e-07 : f32
    %68 = vector.broadcast %cst_23 : f32 to vector<1x16x16xf32>
    %69 = arith.maximumf %67, %68 : vector<1x16x16xf32>
    %70 = vector.broadcast %0 : f32 to vector<1x16x16xf32>
    %71 = arith.mulf %22, %70 : vector<1x16x16xf32>
    %72 = math.log %69 : vector<1x16x16xf32>
    %73 = arith.subf %71, %72 : vector<1x16x16xf32>
    %cst_24 = arith.constant 8.000000e+00 : f32
    %74 = vector.broadcast %cst_24 : f32 to vector<1x16x16xf32>
    %75 = arith.addf %73, %74 : vector<1x16x16xf32>
    %76 = tpu.bitcast %75 : vector<1x16x16xf32> -> vector<1x16x16xi32>
    %c-16_i32 = arith.constant -16 : i32
    %77 = vector.broadcast %c-16_i32 : i32 to vector<1x16x16xi32>
    %78 = arith.andi %76, %77 : vector<1x16x16xi32>
    %79 = arith.ori %78, %25 : vector<1x16x16xi32>
    %80 = tpu.bitcast %79 : vector<1x16x16xi32> -> vector<1x16x16xf32>
    %cst_25 = arith.constant dense<0x7F800000> : vector<1x16xf32>
    %81 = vector.multi_reduction <minimumf>, %80, %cst_25 [2] : vector<1x16x16xf32> to vector<1x16xf32>
    %82 = vector.shape_cast %81 : vector<1x16xf32> to vector<1x16x1xf32>
    %83 = tpu.bitcast %82 : vector<1x16x1xf32> -> vector<1x16x1xi32>
    %c15_i32_26 = arith.constant 15 : i32
    %84 = vector.broadcast %c15_i32_26 : i32 to vector<1x16x1xi32>
    %85 = arith.andi %83, %84 : vector<1x16x1xi32>
    %86 = vector.broadcast %85 : vector<1x16x1xi32> to vector<1x16x16xi32>
    %87 = arith.cmpi eq, %25, %86 : vector<1x16x16xi32>
    %cst_27 = arith.constant 0.000000e+00 : f32
    %88 = vector.broadcast %cst_27 : f32 to vector<1x16x16xf32>
    %89 = arith.select %87, %73, %88 : vector<1x16x16xi1>, vector<1x16x16xf32>
    %cst_28 = arith.constant dense<0.000000e+00> : vector<1x16xf32>
    %90 = vector.multi_reduction <add>, %89, %cst_28 [2] : vector<1x16x16xf32> to vector<1x16xf32>
    %91 = vector.shape_cast %90 : vector<1x16xf32> to vector<1x16x1xf32>
    %cst_29 = arith.constant 0.000000e+00 : f32
    %92 = vector.broadcast %cst_29 : f32 to vector<1x16x1xf32>
    %93 = arith.subf %92, %91 : vector<1x16x1xf32>
    %cst_30 = arith.constant 0x7F800000 : f32
    %94 = vector.broadcast %cst_30 : f32 to vector<1x16x16xf32>
    %95 = arith.select %87, %94, %80 : vector<1x16x16xi1>, vector<1x16x16xf32>
    %cst_31 = arith.constant dense<0x7F800000> : vector<1x16xf32>
    %96 = vector.multi_reduction <minimumf>, %95, %cst_31 [2] : vector<1x16x16xf32> to vector<1x16xf32>
    %97 = vector.shape_cast %96 : vector<1x16xf32> to vector<1x16x1xf32>
    %98 = tpu.bitcast %97 : vector<1x16x1xf32> -> vector<1x16x1xi32>
    %c15_i32_32 = arith.constant 15 : i32
    %99 = vector.broadcast %c15_i32_32 : i32 to vector<1x16x1xi32>
    %100 = arith.andi %98, %99 : vector<1x16x1xi32>
    %101 = vector.broadcast %100 : vector<1x16x1xi32> to vector<1x16x16xi32>
    %102 = arith.cmpi eq, %25, %101 : vector<1x16x16xi32>
    %cst_33 = arith.constant 0.000000e+00 : f32
    %103 = vector.broadcast %cst_33 : f32 to vector<1x16x16xf32>
    %104 = arith.select %102, %73, %103 : vector<1x16x16xi1>, vector<1x16x16xf32>
    %cst_34 = arith.constant dense<0.000000e+00> : vector<1x16xf32>
    %105 = vector.multi_reduction <add>, %104, %cst_34 [2] : vector<1x16x16xf32> to vector<1x16xf32>
    %106 = vector.shape_cast %105 : vector<1x16xf32> to vector<1x16x1xf32>
    %cst_35 = arith.constant 0.000000e+00 : f32
    %107 = vector.broadcast %cst_35 : f32 to vector<1x16x1xf32>
    %108 = arith.subf %107, %106 : vector<1x16x1xf32>
    %cst_36 = arith.constant 0x7F800000 : f32
    %109 = vector.broadcast %cst_36 : f32 to vector<1x16x16xf32>
    %110 = arith.select %102, %109, %95 : vector<1x16x16xi1>, vector<1x16x16xf32>
    %cst_37 = arith.constant dense<0x7F800000> : vector<1x16xf32>
    %111 = vector.multi_reduction <minimumf>, %110, %cst_37 [2] : vector<1x16x16xf32> to vector<1x16xf32>
    %112 = vector.shape_cast %111 : vector<1x16xf32> to vector<1x16x1xf32>
    %113 = tpu.bitcast %112 : vector<1x16x1xf32> -> vector<1x16x1xi32>
    %c15_i32_38 = arith.constant 15 : i32
    %114 = vector.broadcast %c15_i32_38 : i32 to vector<1x16x1xi32>
    %115 = arith.andi %113, %114 : vector<1x16x1xi32>
    %116 = vector.broadcast %115 : vector<1x16x1xi32> to vector<1x16x16xi32>
    %117 = arith.cmpi eq, %25, %116 : vector<1x16x16xi32>
    %cst_39 = arith.constant 0.000000e+00 : f32
    %118 = vector.broadcast %cst_39 : f32 to vector<1x16x16xf32>
    %119 = arith.select %117, %73, %118 : vector<1x16x16xi1>, vector<1x16x16xf32>
    %cst_40 = arith.constant dense<0.000000e+00> : vector<1x16xf32>
    %120 = vector.multi_reduction <add>, %119, %cst_40 [2] : vector<1x16x16xf32> to vector<1x16xf32>
    %121 = vector.shape_cast %120 : vector<1x16xf32> to vector<1x16x1xf32>
    %cst_41 = arith.constant 0.000000e+00 : f32
    %122 = vector.broadcast %cst_41 : f32 to vector<1x16x1xf32>
    %123 = arith.subf %122, %121 : vector<1x16x1xf32>
    %cst_42 = arith.constant 0x7F800000 : f32
    %124 = vector.broadcast %cst_42 : f32 to vector<1x16x16xf32>
    %125 = arith.select %117, %124, %110 : vector<1x16x16xi1>, vector<1x16x16xf32>
    %cst_43 = arith.constant dense<0x7F800000> : vector<1x16xf32>
    %126 = vector.multi_reduction <minimumf>, %125, %cst_43 [2] : vector<1x16x16xf32> to vector<1x16xf32>
    %127 = vector.shape_cast %126 : vector<1x16xf32> to vector<1x16x1xf32>
    %128 = tpu.bitcast %127 : vector<1x16x1xf32> -> vector<1x16x1xi32>
    %c15_i32_44 = arith.constant 15 : i32
    %129 = vector.broadcast %c15_i32_44 : i32 to vector<1x16x1xi32>
    %130 = arith.andi %128, %129 : vector<1x16x1xi32>
    %131 = vector.broadcast %130 : vector<1x16x1xi32> to vector<1x16x16xi32>
    %132 = arith.cmpi eq, %25, %131 : vector<1x16x16xi32>
    %cst_45 = arith.constant 0.000000e+00 : f32
    %133 = vector.broadcast %cst_45 : f32 to vector<1x16x16xf32>
    %134 = arith.select %132, %73, %133 : vector<1x16x16xi1>, vector<1x16x16xf32>
    %cst_46 = arith.constant dense<0.000000e+00> : vector<1x16xf32>
    %135 = vector.multi_reduction <add>, %134, %cst_46 [2] : vector<1x16x16xf32> to vector<1x16xf32>
    %136 = vector.shape_cast %135 : vector<1x16xf32> to vector<1x16x1xf32>
    %cst_47 = arith.constant 0.000000e+00 : f32
    %137 = vector.broadcast %cst_47 : f32 to vector<1x16x1xf32>
    %138 = arith.subf %137, %136 : vector<1x16x1xf32>
    %cst_48 = arith.constant 0x7F800000 : f32
    %139 = vector.broadcast %cst_48 : f32 to vector<1x16x16xf32>
    %140 = arith.select %132, %139, %125 : vector<1x16x16xi1>, vector<1x16x16xf32>
    %cst_49 = arith.constant dense<0x7F800000> : vector<1x16xf32>
    %141 = vector.multi_reduction <minimumf>, %140, %cst_49 [2] : vector<1x16x16xf32> to vector<1x16xf32>
    %142 = vector.shape_cast %141 : vector<1x16xf32> to vector<1x16x1xf32>
    %143 = tpu.bitcast %142 : vector<1x16x1xf32> -> vector<1x16x1xi32>
    %c15_i32_50 = arith.constant 15 : i32
    %144 = vector.broadcast %c15_i32_50 : i32 to vector<1x16x1xi32>
    %145 = arith.andi %143, %144 : vector<1x16x1xi32>
    %146 = vector.broadcast %145 : vector<1x16x1xi32> to vector<1x16x16xi32>
    %147 = arith.cmpi eq, %25, %146 : vector<1x16x16xi32>
    %cst_51 = arith.constant 0.000000e+00 : f32
    %148 = vector.broadcast %cst_51 : f32 to vector<1x16x16xf32>
    %149 = arith.select %147, %73, %148 : vector<1x16x16xi1>, vector<1x16x16xf32>
    %cst_52 = arith.constant dense<0.000000e+00> : vector<1x16xf32>
    %150 = vector.multi_reduction <add>, %149, %cst_52 [2] : vector<1x16x16xf32> to vector<1x16xf32>
    %151 = vector.shape_cast %150 : vector<1x16xf32> to vector<1x16x1xf32>
    %cst_53 = arith.constant 0.000000e+00 : f32
    %152 = vector.broadcast %cst_53 : f32 to vector<1x16x1xf32>
    %153 = arith.subf %152, %151 : vector<1x16x1xf32>
    %154 = tpu.concatenate %93, %108, %123, %138, %153 in 2 : vector<1x16x1xf32>, vector<1x16x1xf32>, vector<1x16x1xf32>, vector<1x16x1xf32>, vector<1x16x1xf32> -> vector<1x16x5xf32>
    %c0_54 = arith.constant 0 : index
    %c0_55 = arith.constant 0 : index
    %c0_56 = arith.constant 0 : index
    %155 = vector.load %arg8[%c0_54, %c0_55, %c0_56] : memref<1x16x5xf32, #tpu.memory_space<vmem>>, vector<1x16x5xf32>
    tpu.vector_store %arg8[%c0_54, %c0_55, %c0_56], %154 {strides = array<i32>} : memref<1x16x5xf32, #tpu.memory_space<vmem>>, vector<1x16x5xf32>,
    %156 = tpu.concatenate %85, %100, %115, %130, %145 in 2 : vector<1x16x1xi32>, vector<1x16x1xi32>, vector<1x16x1xi32>, vector<1x16x1xi32>, vector<1x16x1xi32> -> vector<1x16x5xi32>
    %c0_57 = arith.constant 0 : index
    %c0_58 = arith.constant 0 : index
    %c0_59 = arith.constant 0 : index
    %157 = vector.load %arg9[%c0_57, %c0_58, %c0_59] : memref<1x16x5xi32, #tpu.memory_space<vmem>>, vector<1x16x5xi32>
    tpu.vector_store %arg9[%c0_57, %c0_58, %c0_59], %156 {strides = array<i32>} : memref<1x16x5xi32, #tpu.memory_space<vmem>>, vector<1x16x5xi32>,
    return
  }
  func.func @transform_0(%arg0: i32, %arg1: i32, %arg2: memref<1xi32, #tpu.memory_space<smem>>, %arg3: memref<1xf32, #tpu.memory_space<smem>>) -> (i32, i32, i32) {
    %c0_i32 = arith.constant 0 : i32
    %c0_i32_0 = arith.constant 0 : i32
    %c0_i32_1 = arith.constant 0 : i32
    return %arg0, %c0_i32, %c0_i32_0 : i32, i32, i32
  }
  func.func @transform_1(%arg0: i32, %arg1: i32, %arg2: memref<1xi32, #tpu.memory_space<smem>>, %arg3: memref<1xf32, #tpu.memory_space<smem>>) -> (i32, i32) {
    %c0_i32 = arith.constant 0 : i32
    %c0_i32_0 = arith.constant 0 : i32
    %c0_i32_1 = arith.constant 0 : i32
    return %c0_i32, %c0_i32_0 : i32, i32
  }
  func.func @transform_2(%arg0: i32, %arg1: i32, %arg2: memref<1xi32, #tpu.memory_space<smem>>, %arg3: memref<1xf32, #tpu.memory_space<smem>>) -> (i32, i32) {
    %c0_i32 = arith.constant 0 : i32
    %c0_i32_0 = arith.constant 0 : i32
    %c0_i32_1 = arith.constant 0 : i32
    return %c0_i32, %c0_i32_0 : i32, i32
  }
  func.func @transform_3(%arg0: i32, %arg1: i32, %arg2: memref<1xi32, #tpu.memory_space<smem>>, %arg3: memref<1xf32, #tpu.memory_space<smem>>) -> (i32, i32, i32) {
    %c0_i32 = arith.constant 0 : i32
    %c0_i32_0 = arith.constant 0 : i32
    return %arg0, %arg1, %c0_i32 : i32, i32, i32
  }
  func.func @transform_4(%arg0: i32, %arg1: i32, %arg2: memref<1xi32, #tpu.memory_space<smem>>, %arg3: memref<1xf32, #tpu.memory_space<smem>>) -> (i32, i32, i32) {
    %c0_i32 = arith.constant 0 : i32
    %c0_i32_0 = arith.constant 0 : i32
    return %arg0, %arg1, %c0_i32 : i32, i32, i32
  }
  func.func @transform_5(%arg0: i32, %arg1: i32, %arg2: memref<1xi32, #tpu.memory_space<smem>>, %arg3: memref<1xf32, #tpu.memory_space<smem>>) -> (i32, i32, i32) {
    %c0_i32 = arith.constant 0 : i32
    %c0_i32_0 = arith.constant 0 : i32
    return %arg0, %arg1, %c0_i32 : i32, i32, i32
  }
}

</mosaic_0001>

<llo_original>
// kernel: dgm_d_forward.1
$region0: #{dgm_d_forward.1}
  #allocation0 [shape = 'u32[]', space=smem, size = 0x4, offset = 0x4, fixed_abs, tag = 'smem constant byte address 0x4 - core index']
  #allocation1 [shape = 'u32[144,128]{1,0:T(1,128)}', space=vmem, size = 0x12000, scoped, tag = 'internal scratch']
  #allocation2 [shape = 'f32[1,16,128]{2,1,0:T(8,128)}', space=vmem, size = 0x2000, scoped, tag = 'scratch operand']
  #allocation3 [shape = 'f32[1,1,16]{2,1,0:T(1,128)}', space=vmem, size = 0x200, scoped, tag = 'scratch operand']
  #allocation4 [shape = 's32[1]{0}', space=sflag, size = 0x4, scoped, tag = 'scoped memory for dgm_d_forward.1']
  #allocation5 [shape = 's32[1]{0:T(128)S(6)}', space=smem, size = 0x200, scoped, tag = 'prefetched SMEM operand 0']
  #allocation6 [shape = 'f32[1]{0:T(128)S(6)}', space=smem, size = 0x200, scoped, tag = 'prefetched SMEM operand 1']
  %s0 = inlined_call_operand.<no memory space> [shape: s32[1], index: 0, kind: input, shape index: {}]
  %s1 = inlined_call_operand.<no memory space> [shape: f32[1], index: 1, kind: input, shape index: {}]
  %s2 = inlined_call_operand.vmem [shape: f32[2,16,8], index: 2, kind: input, shape index: {}]
  %s3 = inlined_call_operand.vmem [shape: f32[8,128], index: 3, kind: input, shape index: {}]
  %s4 = inlined_call_operand.vmem [shape: f32[1,128], index: 4, kind: input, shape index: {}]
  %s5 = inlined_call_operand.hbm [shape: f32[2,16,32], index: 5, kind: output, shape index: {0}]
  %s6 = inlined_call_operand.vmem [shape: f32[2,16,5], index: 6, kind: output, shape index: {1}]
  %s7 = inlined_call_operand.vmem [shape: s32[2,16,5], index: 7, kind: output, shape index: {2}]
  %8 = xla_tuple %s5, %s6, %s7
  %s9 = sld [smem:[#allocation0]]
  $region65: #{dgm_d_forward.1} parent=0
    _
  %s11 = ssub.s32 1, %s9
  %s12 = scalar_select 0, %s11, %s9
  %13 = sst [smem:[#allocation5]] %s0
  %14 = sst [smem:[#allocation6]] %s1
  $region1: #{dgm_d_forward.1} parent=0
    #allocation7 [shape = 'u8[16384]{0}', space=vmem, size = 0x4000, scoped, tag = 'output window, operand 0']
    #allocation8 [shape = 's32[2]{0}', space=sflag, size = 0x8, scoped, tag = 'scoped memory for dgm_d_forward.1']
    %15 = vsyncpa [#allocation8], 0
    %s16 = scalar_lea.sflag [#allocation8], 1
    %17 = vsyncpa %s16, 0
    loop: start=0, step=1, limit=4
    $region2: #{dgm_d_forward.1} parent=1 // loop_pre_header
      _
    $region3: #{dgm_d_forward.1} parent=1 // loop_header
      %s19 = sphi 0, %s23
      %p20 = scmp.ge.s32.totalorder %s19, 4
      %s26 = sphi 0, %s38
      %s27 = sphi 0, %s34
      %s28 = sphi 0, %s26
      %s29 = sphi 0, %s27
      %s30 = sphi 0, %s28
      %s31 = sphi 0, %s29
      %s41 = sphi 0, %s43
      %s44 = sphi 0, %s41
      %s45 = sphi 0, %s44
      %s61 = sphi 0, %s45
      %s65 = sphi 0, %s65
      %s67 = sphi 0, %s65
      %s68 = sphi 0, %s67
      %s82 = sphi 0, %s68
      %s86 = sphi 0, %s86
      %s88 = sphi 0, %s86
      %s89 = sphi 0, %s88
      %s103 = sphi 0, %s89
      %s111 = sphi 0, %s113
      %s114 = sphi 0, %s111
      %s115 = sphi 0, %s114
      %s131 = sphi 0, %s115
      %s139 = sphi 0, %s141
      %s142 = sphi 0, %s139
      %s143 = sphi 0, %s142
      %s159 = sphi 0, %s143
      %s167 = sphi 0, %s169
      %s170 = sphi 0, %s167
      %s171 = sphi 0, %s170
      %s187 = sphi 0, %s171
    $region4: #{dgm_d_forward.1} parent=1 // loop_header_branch
      %22 = sbr.rel (%p20) target = $region8
    $region5: #{dgm_d_forward.1} parent=1 // loop_body
      %s24 = ssub.s32 %s19, 1
      %s25 = ssub.s32 %s19, 2
      %s32 = sadd.s32 1, %s27
      %p33 = scmp.ge.s32.totalorder %s32, 1
      %s34 = scalar_select %p33, 0, %s32
      %s35 = sadd.s32 1, %s26
      %s36 = scalar_select %p33, %s35, %s26
      %p37 = scmp.ge.s32.totalorder %s36, 2
      %s38 = scalar_select %p37, 0, %s36
      %s39 = ssub.s32 %s26, %s38
      %p40 = scmp.eq.s32.totalorder %s39, 0
      %s42 = sadd.s32 %s41, 1
      %s43 = scalar_select %p40, %s41, %s42
      %p46 = pneg %p40
      %p47 = scmp.eq.s32.totalorder %s19, 1
      %p48 = por %p46, %p47
      %p49 = scmp.ne.s32.totalorder %s41, %s44
      %p50 = scmp.eq.s32.totalorder %s19, 0
      %p51 = por %p49, %p50
      %p52 = scmp.ne.s32.totalorder %s41, %s44
      %p53 = scmp.eq.s32.totalorder %s24, 1
      %p54 = por %p52, %p53
      %p55 = scmp.ne.s32.totalorder %s44, %s45
      %p56 = scmp.eq.s32.totalorder %s24, 0
      %p57 = por %p55, %p56
      %p58 = scmp.ne.s32.totalorder %s44, %s45
      %p59 = scmp.eq.s32.totalorder %s25, 1
      %p60 = por %p58, %p59
      %p62 = scmp.ne.s32.totalorder %s45, %s61
      %p63 = scmp.eq.s32.totalorder %s25, 0
      %p64 = por %p62, %p63
      %s66 = sadd.s32 %s65, 1
      %p69 = scmp.eq.s32.totalorder %s19, 1
      %p70 = scmp.ne.s32.totalorder %s65, %s67
      %p71 = scmp.eq.s32.totalorder %s19, 0
      %p72 = por %p70, %p71
      %p73 = scmp.ne.s32.totalorder %s65, %s67
      %p74 = scmp.eq.s32.totalorder %s24, 1
      %p75 = por %p73, %p74
      %p76 = scmp.ne.s32.totalorder %s67, %s68
      %p77 = scmp.eq.s32.totalorder %s24, 0
      %p78 = por %p76, %p77
      %p79 = scmp.ne.s32.totalorder %s67, %s68
      %p80 = scmp.eq.s32.totalorder %s25, 1
      %p81 = por %p79, %p80
      %p83 = scmp.ne.s32.totalorder %s68, %s82
      %p84 = scmp.eq.s32.totalorder %s25, 0
      %p85 = por %p83, %p84
      %s87 = sadd.s32 %s86, 1
      %p90 = scmp.eq.s32.totalorder %s19, 1
      %p91 = scmp.ne.s32.totalorder %s86, %s88
      %p92 = scmp.eq.s32.totalorder %s19, 0
      %p93 = por %p91, %p92
      %p94 = scmp.ne.s32.totalorder %s86, %s88
      %p95 = scmp.eq.s32.totalorder %s24, 1
      %p96 = por %p94, %p95
      %p97 = scmp.ne.s32.totalorder %s88, %s89
      %p98 = scmp.eq.s32.totalorder %s24, 0
      %p99 = por %p97, %p98
      %p100 = scmp.ne.s32.totalorder %s88, %s89
      %p101 = scmp.eq.s32.totalorder %s25, 1
      %p102 = por %p100, %p101
      %p104 = scmp.ne.s32.totalorder %s89, %s103
      %p105 = scmp.eq.s32.totalorder %s25, 0
      %p106 = por %p104, %p105
      %s107 = ssub.s32 %s26, %s38
      %s108 = ssub.s32 %s27, %s34
      %s109 = sor.u32 %s107, %s108
      %p110 = scmp.eq.s32.totalorder %s109, 0
      %s112 = sadd.s32 %s111, 1
      %s113 = scalar_select %p110, %s111, %s112
      %p116 = pneg %p110
      %p117 = scmp.eq.s32.totalorder %s19, 1
      %p118 = por %p116, %p117
      %p119 = scmp.ne.s32.totalorder %s111, %s114
      %p120 = scmp.eq.s32.totalorder %s19, 0
      %p121 = por %p119, %p120
      %p122 = scmp.ne.s32.totalorder %s111, %s114
      %p123 = scmp.eq.s32.totalorder %s24, 1
      %p124 = por %p122, %p123
      %p125 = scmp.ne.s32.totalorder %s114, %s115
      %p126 = scmp.eq.s32.totalorder %s24, 0
      %p127 = por %p125, %p126
      %p128 = scmp.ne.s32.totalorder %s114, %s115
      %p129 = scmp.eq.s32.totalorder %s25, 1
      %p130 = por %p128, %p129
      %p132 = scmp.ne.s32.totalorder %s115, %s131
      %p133 = scmp.eq.s32.totalorder %s25, 0
      %p134 = por %p132, %p133
      %s135 = ssub.s32 %s26, %s38
      %s136 = ssub.s32 %s27, %s34
      %s137 = sor.u32 %s135, %s136
      %p138 = scmp.eq.s32.totalorder %s137, 0
      %s140 = sadd.s32 %s139, 1
      %s141 = scalar_select %p138, %s139, %s140
      %p144 = pneg %p138
      %p145 = scmp.eq.s32.totalorder %s19, 1
      %p146 = por %p144, %p145
      %p147 = scmp.ne.s32.totalorder %s139, %s142
      %p148 = scmp.eq.s32.totalorder %s19, 0
      %p149 = por %p147, %p148
      %p150 = scmp.ne.s32.totalorder %s139, %s142
      %p151 = scmp.eq.s32.totalorder %s24, 1
      %p152 = por %p150, %p151
      %p153 = scmp.ne.s32.totalorder %s142, %s143
      %p154 = scmp.eq.s32.totalorder %s24, 0
      %p155 = por %p153, %p154
      %p156 = scmp.ne.s32.totalorder %s142, %s143
      %p157 = scmp.eq.s32.totalorder %s25, 1
      %p158 = por %p156, %p157
      %p160 = scmp.ne.s32.totalorder %s143, %s159
      %p161 = scmp.eq.s32.totalorder %s25, 0
      %p162 = por %p160, %p161
      %s163 = ssub.s32 %s26, %s38
      %s164 = ssub.s32 %s27, %s34
      %s165 = sor.u32 %s163, %s164
      %p166 = scmp.eq.s32.totalorder %s165, 0
      %s168 = sadd.s32 %s167, 1
      %s169 = scalar_select %p166, %s167, %s168
      %p172 = pneg %p166
      %p173 = scmp.eq.s32.totalorder %s19, 1
      %p174 = por %p172, %p173
      %p175 = scmp.ne.s32.totalorder %s167, %s170
      %p176 = scmp.eq.s32.totalorder %s19, 0
      %p177 = por %p175, %p176
      %p178 = scmp.ne.s32.totalorder %s167, %s170
      %p179 = scmp.eq.s32.totalorder %s24, 1
      %p180 = por %p178, %p179
      %p181 = scmp.ne.s32.totalorder %s170, %s171
      %p182 = scmp.eq.s32.totalorder %s24, 0
      %p183 = por %p181, %p182
      %p184 = scmp.ne.s32.totalorder %s170, %s171
      %p185 = scmp.eq.s32.totalorder %s25, 1
      %p186 = por %p184, %p185
      %p188 = scmp.ne.s32.totalorder %s171, %s187
      %p189 = scmp.eq.s32.totalorder %s25, 0
      %p190 = por %p188, %p189
      %p191 = scmp.le.s32.totalorder 1, %s19
      %p192 = scmp.lt.s32.totalorder %s19, 3
      %p193 = pnand %p191, %p192
      %p194 = pneg %p193
      // Predicated region
      $region9: #{dgm_d_forward.1} parent=5 // pred_check
        _
      $region10: #{dgm_d_forward.1} parent=5 // pred_check_branch
        %196 = sbr.rel (%p193) target = $region12
      $region11: #{dgm_d_forward.1} parent=5 // pred_region
        %s197 = ssub.s32 %s19, 1
        // Predicated region
        $region13: #{dgm_d_forward.1} parent=11 // pred_check
          %p198 = pneg %p78
        $region14: #{dgm_d_forward.1} parent=11 // pred_check_branch
          %200 = sbr.rel (%p198) target = $region16
        $region15: #{dgm_d_forward.1} parent=11 // pred_region
          _
        $region16: #{dgm_d_forward.1} parent=11 // pred_fallthru
          _
        // Predicated region
        $region17: #{dgm_d_forward.1} parent=11 // pred_check
          %p201 = pneg %p99
        $region18: #{dgm_d_forward.1} parent=11 // pred_check_branch
          %203 = sbr.rel (%p201) target = $region20
        $region19: #{dgm_d_forward.1} parent=11 // pred_region
          _
        $region20: #{dgm_d_forward.1} parent=11 // pred_fallthru
          _
      $region12: #{dgm_d_forward.1} parent=5 // pred_fallthru
        _
      %p204 = scmp.lt.s32.totalorder %s19, 2
      // Predicated region
      $region21: #{dgm_d_forward.1} parent=5 // pred_check
        %p205 = pneg %p204
      $region22: #{dgm_d_forward.1} parent=5 // pred_check_branch
        %207 = sbr.rel (%p205) target = $region24
      $region23: #{dgm_d_forward.1} parent=5 // pred_region
        // Predicated region
        $region25: #{dgm_d_forward.1} parent=23 // pred_check
          %p208 = pneg %p51
        $region26: #{dgm_d_forward.1} parent=23 // pred_check_branch
          %210 = sbr.rel (%p208) target = $region28
        $region27: #{dgm_d_forward.1} parent=23 // pred_region
          %p211 = scmp.lt.s32.totalorder %s26, 1
          %s212 = scalar_select %p211, %s26, 1
          %s213 = smul.addr %s212, 2
          %s214 = smul.addr %s213, 8
          %s215 = scalar_lea.vmem %s2, %s214
        $region28: #{dgm_d_forward.1} parent=23 // pred_fallthru
          _
      $region24: #{dgm_d_forward.1} parent=5 // pred_fallthru
        _
      %p216 = scmp.le.s32.totalorder 1, %s19
      %p217 = scmp.lt.s32.totalorder %s19, 3
      %p218 = pnand %p216, %p217
      %p219 = pneg %p218
      // Predicated region
      $region29: #{dgm_d_forward.1} parent=5 // pred_check
        _
      $region30: #{dgm_d_forward.1} parent=5 // pred_check_branch
        %221 = sbr.rel (%p218) target = $region32
      $region31: #{dgm_d_forward.1} parent=5 // pred_region
        %s222 = ssub.s32 %s19, 1
        %p223 = scmp.lt.s32.totalorder %s28, 1
        %s224 = scalar_select %p223, %s28, 1
        %s225 = smul.addr %s224, 2
        %s226 = smul.addr %s225, 8
        %s227 = scalar_lea.vmem %s2, %s226
        %p228 = pneg %p57
        %p229 = pneg %p54
        %p230 = pneg %p78
        %p231 = pneg %p75
        %p232 = pneg %p99
        %p233 = pneg %p96
        %p234 = pneg %p127
        %p235 = pneg %p124
        %s236 = sand.u32 %s114, 1
        %s237 = scalar_lea.sflag [#allocation8], %s236
        %s238 = sand.u32 %s114, 1
        %s239 = smul.addr %s238, 16
        %s240 = scalar_lea.vmem [#allocation7], %s239
        %p241 = pneg %p155
        %p242 = pneg %p152
        %s243 = smul.u32 2, %s29
        %p244 = scmp.lt.s32.totalorder %s28, 1
        %s245 = scalar_select %p244, %s28, 1
        %p246 = scmp.lt.s32.totalorder %s243, 1
        %s247 = scalar_select %p246, %s243, 1
        %s248 = smul.addr %s245, 2
        %s249 = sadd.s32 %s247, %s248
        %s250 = smul.addr %s249, 8
        %s251 = scalar_lea.vmem %s6, %s250
        %p252 = pneg %p183
        %p253 = pneg %p180
        %s254 = smul.u32 2, %s29
        %p255 = scmp.lt.s32.totalorder %s28, 1
        %s256 = scalar_select %p255, %s28, 1
        %p257 = scmp.lt.s32.totalorder %s254, 1
        %s258 = scalar_select %p257, %s254, 1
        %s259 = smul.addr %s256, 2
        %s260 = sadd.s32 %s258, %s259
        %s261 = smul.addr %s260, 8
        %s262 = scalar_lea.vmem %s7, %s261
        %p263 = scmp.lt.s32.totalorder %s28, 1
        %s264 = scalar_select %p263, %s28, 1
        %s265 = smul.addr %s264, 2
        %s266 = smul.addr %s265, 8
        %s267 = scalar_lea.vmem %s2, %s266
        %s268 = smul.u32 2, %s29
        %s269 = smul.u32 2, %s29
        %p270 = scmp.lt.s32.totalorder %s28, 1
        %s271 = scalar_select %p270, %s28, 1
        %p272 = scmp.lt.s32.totalorder %s269, 1
        %s273 = scalar_select %p272, %s269, 1
        %s274 = smul.addr %s271, 2
        %s275 = sadd.s32 %s273, %s274
        %s276 = smul.addr %s275, 8
        %s277 = scalar_lea.vmem %s6, %s276
        %s278 = smul.u32 2, %s29
        %s279 = smul.u32 2, %s29
        %p280 = scmp.lt.s32.totalorder %s28, 1
        %s281 = scalar_select %p280, %s28, 1
        %p282 = scmp.lt.s32.totalorder %s279, 1
        %s283 = scalar_select %p282, %s279, 1
        %s284 = smul.addr %s281, 2
        %s285 = sadd.s32 %s283, %s284
        %s286 = smul.addr %s285, 8
        %s287 = scalar_lea.vmem %s7, %s286
        %s288 = smul.u32 2, %s29
        %s289 = sld [smem:[#allocation6]]
        %p290 = scmp.eq.s32.totalorder %s29, 0
        // Predicated region
        $region33: #{dgm_d_forward.1} parent=31 // pred_check
          %p291 = pneg %p290
        $region34: #{dgm_d_forward.1} parent=31 // pred_check_branch
          %293 = sbr.rel (%p291) target = $region36
        $region35: #{dgm_d_forward.1} parent=31 // pred_region
          %v294 = vld [vmem:[%s267] sm:$0xff]
          %v295 = vld [vmem:[%s267 + $0x8] sm:$0xff]
          %v296 = vld [vmem:[%s3] sm:$0xff]
          %v297 = vld [vmem:[%s4] sm:$0x1]
          %v299 = vlaneseq
          %v300 = vshrl.u32 %v299, 7
          %v301 = vsub.s32 0, %v300
          %v302 = vrot.slane %v297, %v301
          %vm304 = vcmask 64512
          %v306 = vsel %vm304, %v294, 0
          %v309 = vsel %vm304, %v295, 0
          %311 = vmatprep.subr.mxu0 0.0
          %312 = vmatpush1.msra.mxu0 %v296
          %313 = vmatprep.subr.mxu0 0.0
          %314 = vmatpush1.msra.mxu0 0.0
          %315 = vmatprep.subr.mxu0 0.0
          %316 = vmatpush1.msra.mxu0 0.0
          %317 = vmatprep.subr.mxu0 0.0
          %318 = vmatpush1.msra.mxu0 0.0
          %319 = vmatprep.subr.mxu0 0.0
          %320 = vmatpush1.msra.mxu0 0.0
          %321 = vmatprep.subr.mxu0 0.0
          %322 = vmatpush1.msra.mxu0 0.0
          %323 = vmatprep.subr.mxu0 0.0
          %324 = vmatpush1.msra.mxu0 0.0
          %325 = vmatprep.subr.mxu0 0.0
          %326 = vmatpush1.msra.mxu0 0.0
          %327 = vmatprep.subr.mxu0 0.0
          %328 = vmatpush1.msra.mxu0 0.0
          %329 = vmatprep.subr.mxu0 0.0
          %330 = vmatpush1.msra.mxu0 0.0
          %331 = vmatprep.subr.mxu0 0.0
          %332 = vmatpush1.msra.mxu0 0.0
          %333 = vmatprep.subr.mxu0 0.0
          %334 = vmatpush1.msra.mxu0 0.0
          %335 = vmatprep.subr.mxu0 0.0
          %336 = vmatpush1.msra.mxu0 0.0
          %337 = vmatprep.subr.mxu0 0.0
          %338 = vmatpush1.msra.mxu0 0.0
          %339 = vmatprep.subr.mxu0 0.0
          %340 = vmatpush1.msra.mxu0 0.0
          %341 = vmatprep.subr.mxu0 0.0
          %342 = vmatpush1.msra.mxu0 0.0
          %343 = vmatprep.subr.mxu0 0.0
          %344 = vmatpush1.msra.mxu0 0.0
          %345 = vmatprep.subr.mxu0 0.0
          %346 = vmatpush1.msra.mxu0 0.0
          %347 = vmatprep.subr.mxu0 0.0
          %348 = vmatpush1.msra.mxu0 0.0
          %349 = vmatprep.subr.mxu0 0.0
          %350 = vmatpush1.msra.mxu0 0.0
          %351 = vmatprep.subr.mxu0 0.0
          %352 = vmatpush1.msra.mxu0 0.0
          %353 = vmatprep.subr.mxu0 0.0
          %354 = vmatpush1.msra.mxu0 0.0
          %355 = vmatprep.subr.mxu0 0.0
          %356 = vmatpush1.msra.mxu0 0.0
          %357 = vmatprep.subr.mxu0 0.0
          %358 = vmatpush1.msra.mxu0 0.0
          %359 = vmatprep.subr.mxu0 0.0
          %360 = vmatpush1.msra.mxu0 0.0
          %361 = vmatprep.subr.mxu0 0.0
          %362 = vmatpush1.msra.mxu0 0.0
          %363 = vmatprep.subr.mxu0 0.0
          %364 = vmatpush1.msra.mxu0 0.0
          %365 = vmatprep.subr.mxu0 0.0
          %366 = vmatpush1.msra.mxu0 0.0
          %367 = vmatprep.subr.mxu0 0.0
          %368 = vmatpush1.msra.mxu0 0.0
          %369 = vmatprep.subr.mxu0 0.0
          %370 = vmatpush1.msra.mxu0 0.0
          %371 = vmatprep.subr.mxu0 0.0
          %372 = vmatpush1.msra.mxu0 0.0
          %373 = vmatprep.subr.mxu0 0.0
          %374 = vmatpush1.msra.mxu0 0.0
          %375 = vmatprep.mubr.f32.mxu0 0.0
          %376 = vmatmul.mubr.f32.gmra.mrb[0].mxu0 %v306
          %v377 = vpop.f32.mrb[0].mxu0
          %v378 = vadd.f32 %v302, %v377
          %v379 = vpop.f32.mrb[0].mxu0
          %380 = vmatprep.mubr.f32.mxu0 0.0
          %381 = vmatmul.mubr.f32.gmra.mrb[0].mxu0 %v309
          %v382 = vpop.f32.mrb[0].mxu0
          %v383 = vadd.f32 %v302, %v382
          %v384 = vpop.f32.mrb[0].mxu0
          %385 = vdwg.mxu0
          %386 = vst [vmem:[#allocation2] sm:$0xff] %v378
          %387 = vst [vmem:[#allocation2 + $0x8] sm:$0xff] %v383
          %v388 = vmul.f32 %v378, %v378
          %v389 = vmul.f32 %v383, %v383
          %390 = vadd.xlane.f32.xlu0 %v388
          %v391 = vpop.xlane.xlu0 %390
          %392 = vadd.xlane.f32.xlu0 %v389
          %v393 = vpop.xlane.xlu0 %392
          %v396 = vlaneseq
          %v397 = vand.u32 %v396, 127
          %v398 = vlaneseq
          %v399 = vshrl.u32 %v398, 7
          %v400 = vsub.s32 %v397, %v399
          %v401 = vrot.slane %v391, %v400
          %v402 = vadd.s32 %v397, 4294967288
          %v403 = vlaneseq
          %v404 = vshrl.u32 %v403, 7
          %v405 = vsub.s32 %v402, %v404
          %v406 = vrot.slane %v393, %v405
          %vm407 = vcmask 130112
          %v408 = vsel %vm407, %v406, %v401
          %vm410 = vcmask 122880
          %411 = vst.msk [vmem:[#allocation3] sm:$0x1] %vm410, %v408
        $region36: #{dgm_d_forward.1} parent=31 // pred_fallthru
          _
        %s412 = smul.u32 %s29, 16
        %s413 = scalar_lea.vmem [#allocation2], %s412
        %v414 = vld [vmem:[%s413] sm:$0xff]
        %v415 = vld [vmem:[%s413 + $0x8] sm:$0xff]
        %v416 = vld [vmem:[#allocation2] sm:$0xff]
        %v417 = vld [vmem:[#allocation2 + $0x8] sm:$0xff]
        %vm418 = vcmask 261120
        %419 = vst.msk [vmem:[%s240] sm:$0xff] %vm418, %v414
        %420 = vst.msk [vmem:[%s240 + $0x8] sm:$0xff] %vm418, %v415
        %421 = vmatprep.subr.mxu0 0.0
        %422 = vmatpush1.xpose.msra.mxu0 %v416
        %423 = vmatprep.subr.mxu0 0.0
        %424 = vmatpush1.xpose.msra.mxu0 %v417
        %425 = vmatprep.subr.mxu0 0.0
        %426 = vmatpush1.xpose.msra.mxu0 0.0
        %427 = vmatprep.subr.mxu0 0.0
        %428 = vmatpush1.xpose.msra.mxu0 0.0
        %429 = vmatprep.subr.mxu0 0.0
        %430 = vmatpush1.xpose.msra.mxu0 0.0
        %431 = vmatprep.subr.mxu0 0.0
        %432 = vmatpush1.xpose.msra.mxu0 0.0
        %433 = vmatprep.subr.mxu0 0.0
        %434 = vmatpush1.xpose.msra.mxu0 0.0
        %435 = vmatprep.subr.mxu0 0.0
        %436 = vmatpush1.xpose.msra.mxu0 0.0
        %437 = vmatprep.subr.mxu0 0.0
        %438 = vmatpush1.xpose.msra.mxu0 0.0
        %439 = vmatprep.subr.mxu0 0.0
        %440 = vmatpush1.xpose.msra.mxu0 0.0
        %441 = vmatprep.subr.mxu0 0.0
        %442 = vmatpush1.xpose.msra.mxu0 0.0
        %443 = vmatprep.subr.mxu0 0.0
        %444 = vmatpush1.xpose.msra.mxu0 0.0
        %445 = vmatprep.subr.mxu0 0.0
        %446 = vmatpush1.xpose.msra.mxu0 0.0
        %447 = vmatprep.subr.mxu0 0.0
        %448 = vmatpush1.xpose.msra.mxu0 0.0
        %449 = vmatprep.subr.mxu0 0.0
        %450 = vmatpush1.xpose.msra.mxu0 0.0
        %451 = vmatprep.subr.mxu0 0.0
        %452 = vmatpush1.xpose.msra.mxu0 0.0
        %453 = vmatprep.subr.mxu0 0.0
        %454 = vmatpush1.xpose.msra.mxu0 0.0
        %455 = vmatprep.subr.mxu0 0.0
        %456 = vmatpush1.xpose.msra.mxu0 0.0
        %457 = vmatprep.subr.mxu0 0.0
        %458 = vmatpush1.xpose.msra.mxu0 0.0
        %459 = vmatprep.subr.mxu0 0.0
        %460 = vmatpush1.xpose.msra.mxu0 0.0
        %461 = vmatprep.subr.mxu0 0.0
        %462 = vmatpush1.xpose.msra.mxu0 0.0
        %463 = vmatprep.subr.mxu0 0.0
        %464 = vmatpush1.xpose.msra.mxu0 0.0
        %465 = vmatprep.subr.mxu0 0.0
        %466 = vmatpush1.xpose.msra.mxu0 0.0
        %467 = vmatprep.subr.mxu0 0.0
        %468 = vmatpush1.xpose.msra.mxu0 0.0
        %469 = vmatprep.subr.mxu0 0.0
        %470 = vmatpush1.xpose.msra.mxu0 0.0
        %471 = vmatprep.subr.mxu0 0.0
        %472 = vmatpush1.xpose.msra.mxu0 0.0
        %473 = vmatprep.subr.mxu0 0.0
        %474 = vmatpush1.xpose.msra.mxu0 0.0
        %475 = vmatprep.subr.mxu0 0.0
        %476 = vmatpush1.xpose.msra.mxu0 0.0
        %477 = vmatprep.subr.mxu0 0.0
        %478 = vmatpush1.xpose.msra.mxu0 0.0
        %479 = vmatprep.subr.mxu0 0.0
        %480 = vmatpush1.xpose.msra.mxu0 0.0
        %481 = vmatprep.subr.mxu0 0.0
        %482 = vmatpush1.xpose.msra.mxu0 0.0
        %483 = vmatprep.subr.mxu0 0.0
        %484 = vmatpush1.xpose.msra.mxu0 0.0
        %485 = vmatprep.mubr.f32.mxu0 0.0
        %486 = vmatmul.mubr.f32.gmra.mrb[0].mxu0 %v414
        %v487 = vpop.f32.mrb[0].mxu0
        %v488 = vadd.f32 0.0, %v487
        %v489 = vpop.f32.mrb[0].mxu0
        %490 = vmatprep.mubr.f32.mxu0 0.0
        %491 = vmatmul.mubr.f32.gmra.mrb[0].mxu0 %v415
        %v492 = vpop.f32.mrb[0].mxu0
        %v493 = vadd.f32 0.0, %v492
        %v494 = vpop.f32.mrb[0].mxu0
        %495 = vdwg.mxu0
        %v496 = vmul.f32 %v414, %v414
        %v497 = vmul.f32 %v415, %v415
        %498 = vadd.xlane.f32.xlu0 %v496
        %v499 = vpop.xlane.xlu0 %498
        %500 = vadd.xlane.f32.xlu0 %v497
        %v501 = vpop.xlane.xlu0 %500
        %v502 = vld [vmem:[#allocation3] sm:$0x1]
        %v504 = vlaneseq
        %v505 = vshrl.u32 %v504, 7
        %v506 = vsub.s32 0, %v505
        %v507 = vrot.slane %v502, %v506
        %v509 = vadd.f32 %v499, %v507
        %v510 = vadd.f32 %v501, %v507
        %v511 = vmul.f32 %v488, 2.0
        %v512 = vmul.f32 %v493, 2.0
        %v513 = vsub.f32 %v509, %v511
        %v514 = vsub.f32 %v510, %v512
        %v515 = vmax.f32 %v513, 0.0
        %v516 = vmax.f32 %v514, 0.0
        %v517 = vlaneseq
        %v518 = vshrl.u32 %v517, 7
        %v519 = vadd.s32 %v518, 8
        %v520 = vlaneseq
        %v521 = vand.u32 %v520, 127
        %v522 = vstv %s28
        %v523 = vmul.u32 %v522, 16
        %v524 = vstv %s412
        %v525 = vadd.s32 %v524, %v518
        %v526 = vadd.s32 %v524, %v519
        %v527 = vadd.s32 %v523, %v525
        %v528 = vadd.s32 %v523, %v526
        %v529 = vmul.u32 %v527, 16
        %v530 = vmul.u32 %v528, 16
        %v531 = vadd.s32 %v529, %v521
        %v532 = vadd.s32 %v530, %v521
        %v533 = vmul.u32 %v531, 2654435769
        %v534 = vmul.u32 %v532, 2654435769
        %s535 = sld [smem:[#allocation5]]
        %v536 = vstv %s535
        %v537 = vadd.s32 %v533, %v536
        %v538 = vadd.s32 %v534, %v536
        %v539 = vshrl.u32 %v537, 16
        %v540 = vshrl.u32 %v538, 16
        %v541 = vxor.u32 %v537, %v539
        %v542 = vxor.u32 %v538, %v540
        %v543 = vmul.u32 %v541, 2146121005
        %v544 = vmul.u32 %v542, 2146121005
        %v545 = vshrl.u32 %v543, 15
        %v546 = vshrl.u32 %v544, 15
        %v547 = vxor.u32 %v543, %v545
        %v548 = vxor.u32 %v544, %v546
        %v549 = vmul.u32 %v547, 2221713035
        %v550 = vmul.u32 %v548, 2221713035
        %v551 = vshrl.u32 %v549, 16
        %v552 = vshrl.u32 %v550, 16
        %v553 = vxor.u32 %v549, %v551
        %v554 = vxor.u32 %v550, %v552
        %v555 = vshrl.u32 %v553, 9
        %v556 = vshrl.u32 %v554, 9
        %v557 = vor.u32 %v555, 1065353217
        %v558 = vor.u32 %v556, 1065353217
        %v561 = vsub.f32 %v557, 1.0
        %v562 = vsub.f32 %v558, 1.0
        %v563 = vlog2.pop %v561
        %v564 = vmul.f32 %v563, 0.6931472
        %v565 = vlog2.pop %v562
        %v566 = vmul.f32 %v565, 0.6931472
        %v567 = vsub.f32 0.0, %v564
        %v568 = vsub.f32 0.0, %v566
        %v569 = vmax.f32 %v567, 1e-07
        %v570 = vmax.f32 %v568, 1e-07
        %v571 = vstv %s289
        %v572 = vmul.f32 %v515, %v571
        %v573 = vmul.f32 %v516, %v571
        %v574 = vlog2.pop %v569
        %v575 = vmul.f32 %v574, 0.6931472
        %v576 = vlog2.pop %v570
        %v577 = vmul.f32 %v576, 0.6931472
        %v578 = vsub.f32 %v572, %v575
        %v579 = vsub.f32 %v573, %v577
        %v580 = vadd.f32 %v578, 8.0
        %v581 = vadd.f32 %v579, 8.0
        %v584 = vand.u32 %v580, 4294967280
        %v585 = vand.u32 %v581, 4294967280
        %v586 = vor.u32 %v584, %v521
        %v587 = vor.u32 %v585, %v521
        %vm590 = vcmask 130048
        %v591 = vsel %vm590, %v586, inf
        %592 = vmin.xlane.f32.xlu0 %v591
        %v593 = vpop.xlane.xlu0 %592
        %v594 = vsel %vm590, %v587, inf
        %595 = vmin.xlane.f32.xlu0 %v594
        %v596 = vpop.xlane.xlu0 %595
        %v599 = vand.u32 %v593, 15
        %v600 = vand.u32 %v596, 15
        %vm601 = vcmp.eq.s32.totalorder %v521, %v599
        %vm602 = vcmp.eq.s32.totalorder %v521, %v600
        %v603 = vsel %vm601, %v578, 0.0
        %v604 = vsel %vm602, %v579, 0.0
        %v605 = vsel %vm590, %v603, 0.0
        %606 = vadd.xlane.f32.xlu0 %v605
        %v607 = vpop.xlane.xlu0 %606
        %v608 = vsel %vm590, %v604, 0.0
        %609 = vadd.xlane.f32.xlu0 %v608
        %v610 = vpop.xlane.xlu0 %609
        %v611 = vsub.f32 0.0, %v607
        %v612 = vsub.f32 0.0, %v610
        %v613 = vsel %vm601, inf, %v586
        %v614 = vsel %vm602, inf, %v587
        %v615 = vsel %vm590, %v613, inf
        %616 = vmin.xlane.f32.xlu0 %v615
        %v617 = vpop.xlane.xlu0 %616
        %v618 = vsel %vm590, %v614, inf
        %619 = vmin.xlane.f32.xlu0 %v618
        %v620 = vpop.xlane.xlu0 %619
        %v623 = vand.u32 %v617, 15
        %v624 = vand.u32 %v620, 15
        %vm625 = vcmp.eq.s32.totalorder %v521, %v623
        %vm626 = vcmp.eq.s32.totalorder %v521, %v624
        %v627 = vsel %vm625, %v578, 0.0
        %v628 = vsel %vm626, %v579, 0.0
        %v629 = vsel %vm590, %v627, 0.0
        %630 = vadd.xlane.f32.xlu0 %v629
        %v631 = vpop.xlane.xlu0 %630
        %v632 = vsel %vm590, %v628, 0.0
        %633 = vadd.xlane.f32.xlu0 %v632
        %v634 = vpop.xlane.xlu0 %633
        %v635 = vsub.f32 0.0, %v631
        %v636 = vsub.f32 0.0, %v634
        %v637 = vsel %vm625, inf, %v613
        %v638 = vsel %vm626, inf, %v614
        %v639 = vsel %vm590, %v637, inf
        %640 = vmin.xlane.f32.xlu0 %v639
        %v641 = vpop.xlane.xlu0 %640
        %v642 = vsel %vm590, %v638, inf
        %643 = vmin.xlane.f32.xlu0 %v642
        %v644 = vpop.xlane.xlu0 %643
        %v647 = vand.u32 %v641, 15
        %v648 = vand.u32 %v644, 15
        %vm649 = vcmp.eq.s32.totalorder %v521, %v647
        %vm650 = vcmp.eq.s32.totalorder %v521, %v648
        %v651 = vsel %vm649, %v578, 0.0
        %v652 = vsel %vm650, %v579, 0.0
        %v653 = vsel %vm590, %v651, 0.0
        %654 = vadd.xlane.f32.xlu0 %v653
        %v655 = vpop.xlane.xlu0 %654
        %v656 = vsel %vm590, %v652, 0.0
        %657 = vadd.xlane.f32.xlu0 %v656
        %v658 = vpop.xlane.xlu0 %657
        %v659 = vsub.f32 0.0, %v655
        %v660 = vsub.f32 0.0, %v658
        %v661 = vsel %vm649, inf, %v637
        %v662 = vsel %vm650, inf, %v638
        %v663 = vsel %vm590, %v661, inf
        %664 = vmin.xlane.f32.xlu0 %v663
        %v665 = vpop.xlane.xlu0 %664
        %v666 = vsel %vm590, %v662, inf
        %667 = vmin.xlane.f32.xlu0 %v666
        %v668 = vpop.xlane.xlu0 %667
        %v671 = vand.u32 %v665, 15
        %v672 = vand.u32 %v668, 15
        %vm673 = vcmp.eq.s32.totalorder %v521, %v671
        %vm674 = vcmp.eq.s32.totalorder %v521, %v672
        %v675 = vsel %vm673, %v578, 0.0
        %v676 = vsel %vm674, %v579, 0.0
        %v677 = vsel %vm590, %v675, 0.0
        %678 = vadd.xlane.f32.xlu0 %v677
        %v679 = vpop.xlane.xlu0 %678
        %v680 = vsel %vm590, %v676, 0.0
        %681 = vadd.xlane.f32.xlu0 %v680
        %v682 = vpop.xlane.xlu0 %681
        %v683 = vsub.f32 0.0, %v679
        %v684 = vsub.f32 0.0, %v682
        %v685 = vsel %vm673, inf, %v661
        %v686 = vsel %vm674, inf, %v662
        %v687 = vsel %vm590, %v685, inf
        %688 = vmin.xlane.f32.xlu0 %v687
        %v689 = vpop.xlane.xlu0 %688
        %v690 = vsel %vm590, %v686, inf
        %691 = vmin.xlane.f32.xlu0 %v690
        %v692 = vpop.xlane.xlu0 %691
        %v695 = vand.u32 %v689, 15
        %v696 = vand.u32 %v692, 15
        %vm697 = vcmp.eq.s32.totalorder %v521, %v695
        %vm698 = vcmp.eq.s32.totalorder %v521, %v696
        %v699 = vsel %vm697, %v578, 0.0
        %v700 = vsel %vm698, %v579, 0.0
        %v701 = vsel %vm590, %v699, 0.0
        %702 = vadd.xlane.f32.xlu0 %v701
        %v703 = vpop.xlane.xlu0 %702
        %v704 = vsel %vm590, %v700, 0.0
        %705 = vadd.xlane.f32.xlu0 %v704
        %v706 = vpop.xlane.xlu0 %705
        %v707 = vsub.f32 0.0, %v703
        %v708 = vsub.f32 0.0, %v706
        %vm709 = vcmask 7168
        %v710 = vsel %vm709, %v611, %v635
        %v711 = vsel %vm709, %v612, %v636
        %vm712 = vcmask 15360
        %v713 = vsel %vm712, %v710, %v659
        %v714 = vsel %vm712, %v711, %v660
        %vm715 = vcmask 23552
        %v716 = vsel %vm715, %v713, %v683
        %v717 = vsel %vm715, %v714, %v684
        %vm718 = vcmask 31744
        %v719 = vsel %vm718, %v716, %v707
        %v720 = vsel %vm718, %v717, %v708
        %vm721 = vcmask 39936
        %722 = vst.msk [vmem:[%s277] sm:$0xff] %vm721, %v719
        %723 = vst.msk [vmem:[%s277 + $0x8] sm:$0xff] %vm721, %v720
        %v724 = vsel %vm709, %v599, %v623
        %v725 = vsel %vm709, %v600, %v624
        %v726 = vsel %vm712, %v724, %v647
        %v727 = vsel %vm712, %v725, %v648
        %v728 = vsel %vm715, %v726, %v671
        %v729 = vsel %vm715, %v727, %v672
        %v730 = vsel %vm718, %v728, %v695
        %v731 = vsel %vm718, %v729, %v696
        %732 = vst.msk [vmem:[%s287] sm:$0xff] %vm721, %v730
        %733 = vst.msk [vmem:[%s287 + $0x8] sm:$0xff] %vm721, %v731
        %s734 = sand.u32 %s114, 1
        %s735 = scalar_lea.sflag [#allocation8], %s734
        %s736 = sand.u32 %s114, 1
        %s737 = smul.addr %s736, 16
        %s738 = scalar_lea.vmem [#allocation7], %s737
        %s739 = smul.u32 2, %s29
        %p740 = scmp.lt.s32.totalorder %s28, 1
        %s741 = scalar_select %p740, %s28, 1
        %p742 = scmp.lt.s32.totalorder %s739, 1
        %s743 = scalar_select %p742, %s739, 1
        %s744 = smul.addr %s741, 2
        %s745 = sadd.s32 %s743, %s744
        %s746 = smul.addr %s745, 8
        %s747 = scalar_lea.vmem %s6, %s746
        %s748 = smul.u32 2, %s29
        %p749 = scmp.lt.s32.totalorder %s28, 1
        %s750 = scalar_select %p749, %s28, 1
        %p751 = scmp.lt.s32.totalorder %s748, 1
        %s752 = scalar_select %p751, %s748, 1
        %s753 = smul.addr %s750, 2
        %s754 = sadd.s32 %s752, %s753
        %s755 = smul.addr %s754, 8
        %s756 = scalar_lea.vmem %s7, %s755
        // Predicated region
        $region37: #{dgm_d_forward.1} parent=31 // pred_check
          %p757 = pneg %p124
        $region38: #{dgm_d_forward.1} parent=31 // pred_check_branch
          %759 = sbr.rel (%p757) target = $region40
        $region39: #{dgm_d_forward.1} parent=31 // pred_region
          %s760 = smul.u32 2, %s29
          %s762 = ssub.s32 256, 256
          %763 = vsyncadd %s735, %s762
          %s764 = smul.addr %s28, 2
          %s765 = sadd.s32 %s760, %s764
          %s766 = smul.addr %s765, 128
          %s767 = scalar_lea.hbm %s5, %s766
          %s768 = sshll.u32 %s738, 4
          %s769 = int_to_ptr.vmem [resolvable:$true] %s768
          %774 = dma.vmem_to_hbm [thread:$0]  %s769, 256, %s767, %s735, 128, 128, 8
        $region40: #{dgm_d_forward.1} parent=31 // pred_fallthru
          _
        // Predicated region
        $region41: #{dgm_d_forward.1} parent=31 // pred_check
          %p775 = pneg %p152
        $region42: #{dgm_d_forward.1} parent=31 // pred_check_branch
          %777 = sbr.rel (%p775) target = $region44
        $region43: #{dgm_d_forward.1} parent=31 // pred_region
          %s778 = smul.u32 2, %s29
        $region44: #{dgm_d_forward.1} parent=31 // pred_fallthru
          _
        // Predicated region
        $region45: #{dgm_d_forward.1} parent=31 // pred_check
          %p779 = pneg %p180
        $region46: #{dgm_d_forward.1} parent=31 // pred_check_branch
          %781 = sbr.rel (%p779) target = $region48
        $region47: #{dgm_d_forward.1} parent=31 // pred_region
          %s782 = smul.u32 2, %s29
        $region48: #{dgm_d_forward.1} parent=31 // pred_fallthru
          _
      $region32: #{dgm_d_forward.1} parent=5 // pred_fallthru
        _
      %p783 = scmp.le.s32.totalorder 2, %s19
      // Predicated region
      $region49: #{dgm_d_forward.1} parent=5 // pred_check
        %p784 = pneg %p783
      $region50: #{dgm_d_forward.1} parent=5 // pred_check_branch
        %786 = sbr.rel (%p784) target = $region52
      $region51: #{dgm_d_forward.1} parent=5 // pred_region
        %s787 = ssub.s32 %s19, 2
        // Predicated region
        $region53: #{dgm_d_forward.1} parent=51 // pred_check
          %p788 = pneg %p130
        $region54: #{dgm_d_forward.1} parent=51 // pred_check_branch
          %790 = sbr.rel (%p788) target = $region56
        $region55: #{dgm_d_forward.1} parent=51 // pred_region
          %s791 = sand.u32 %s115, 1
          %s792 = scalar_lea.sflag [#allocation8], %s791
          %s793 = sand.u32 %s115, 1
          %s794 = smul.addr %s793, 16
          %s795 = scalar_lea.vmem [#allocation7], %s794
          %796 = dma.done %s792, 256
        $region56: #{dgm_d_forward.1} parent=51 // pred_fallthru
          _
        // Predicated region
        $region57: #{dgm_d_forward.1} parent=51 // pred_check
          %p797 = pneg %p158
        $region58: #{dgm_d_forward.1} parent=51 // pred_check_branch
          %799 = sbr.rel (%p797) target = $region60
        $region59: #{dgm_d_forward.1} parent=51 // pred_region
          %s800 = smul.u32 2, %s31
          %p801 = scmp.lt.s32.totalorder %s30, 1
          %s802 = scalar_select %p801, %s30, 1
          %p803 = scmp.lt.s32.totalorder %s800, 1
          %s804 = scalar_select %p803, %s800, 1
          %s805 = smul.addr %s802, 2
          %s806 = sadd.s32 %s804, %s805
          %s807 = smul.addr %s806, 8
          %s808 = scalar_lea.vmem %s6, %s807
        $region60: #{dgm_d_forward.1} parent=51 // pred_fallthru
          _
        // Predicated region
        $region61: #{dgm_d_forward.1} parent=51 // pred_check
          %p809 = pneg %p186
        $region62: #{dgm_d_forward.1} parent=51 // pred_check_branch
          %811 = sbr.rel (%p809) target = $region64
        $region63: #{dgm_d_forward.1} parent=51 // pred_region
          %s812 = smul.u32 2, %s31
          %p813 = scmp.lt.s32.totalorder %s30, 1
          %s814 = scalar_select %p813, %s30, 1
          %p815 = scmp.lt.s32.totalorder %s812, 1
          %s816 = scalar_select %p815, %s812, 1
          %s817 = smul.addr %s814, 2
          %s818 = sadd.s32 %s816, %s817
          %s819 = smul.addr %s818, 8
          %s820 = scalar_lea.vmem %s7, %s819
        $region64: #{dgm_d_forward.1} parent=51 // pred_fallthru
          _
      $region52: #{dgm_d_forward.1} parent=5 // pred_fallthru
        _
    $region6: #{dgm_d_forward.1} parent=1 // loop_footer
      %s23 = sadd.s32 1, %s19
    $region7: #{dgm_d_forward.1} parent=1 // loop_footer_branch
      %18 = sbr.rel target = $region3
    $region8: #{dgm_d_forward.1} parent=1 // loop_exit
      _
    %821 = vsyncpa [#allocation8], 1
    %s822 = scalar_lea.sflag [#allocation8], 1
    %823 = vsyncpa %s822, 1

</llo_original>
